<compile_context>
chip_gen: v7x
topology: tpu7x:2x2x1
jax: 0.10.0
libtpu: 0.0.40
codegen_flags: <defaults>
</compile_context>

<pallas_src>
import jax
import jax.numpy as jnp
from jax.experimental import pallas as pl
from jax.experimental.pallas import tpu as pltpu


def _transition_matmul_kernel(x_ref, w_ref, o_ref):
    # x_ref: (tile_m, Cin)  bf16  pooled post-BN/ReLU activations (rows)
    # w_ref: (Cin, Cout)    bf16  1x1 conv weight (0.25 pool factor folded in)
    # o_ref: (tile_m, Cout) bf16
    o_ref[...] = jnp.dot(
        x_ref[...], w_ref[...], preferred_element_type=jnp.float32
    ).astype(o_ref.dtype)


def _pick_tile_m(m_total, c_in, c_out, vmem_budget_bytes, max_tile_m=2048):
    """Largest row tile that keeps (2x bf16 x-block + 2x bf16 out-block +
    1x bf16 weight) under the VMEM budget, preferring 256/128-multiples."""
    w_bytes = 2 * c_in * c_out
    per_row = 4 * (c_in + c_out)          # 2 buffers * 2 bytes * (Cin + Cout)
    tm = max((vmem_budget_bytes - w_bytes) // per_row, 8)
    tm = int(min(tm, max_tile_m))
    if tm >= m_total:
        return int(m_total)               # single block covering all rows
    for step in (256, 128, 8):            # MXU/layout-friendly multiples
        if tm >= step:
            return tm - (tm % step)
    return 8


def transition_forward(x_nchw, gamma, beta, running_mean, running_var, conv_w,
                       eps=1e-5, tile_m=None, single_buffer_weight=True):
    """Pallas implementation of _Transition.forward (NCHW in, NCHW out)."""
    N, Cin, H, W = x_nchw.shape
    Cout = conv_w.shape[0]
    Hq, Wq = H // 2, W // 2
    M = N * Hq * Wq                       # batch folded into the row axis

    # --- Fused XLA pre-pass (one HBM read of x): BN (eval) + ReLU in fp32,
    # then the 2x2 tap-sum.  The AvgPool 0.25 goes into the conv weight.
    scale = (gamma / jnp.sqrt(running_var + eps)).astype(jnp.float32)
    shift = beta.astype(jnp.float32) - running_mean.astype(jnp.float32) * scale
    y = x_nchw.astype(jnp.float32) * scale[None, :, None, None] \
        + shift[None, :, None, None]
    y = jnp.maximum(y, 0.0)
    pooled = y.reshape(N, Cin, Hq, 2, Wq, 2).sum(axis=(3, 5))   # (N,Cin,Hq,Wq)

    # Only this 4x-smaller tensor gets the channels-last transpose, in bf16.
    rows = jnp.transpose(pooled.astype(jnp.bfloat16), (0, 2, 3, 1))
    rows = rows.reshape(M, Cin)

    # Conv weight (Cout, Cin, 1, 1) -> (Cin, Cout) bf16, 0.25 folded (exact).
    wmat = (conv_w.reshape(Cout, Cin).T.astype(jnp.float32) * 0.25)
    wmat = wmat.astype(jnp.bfloat16)

    if tile_m is None:
        tile_m = _pick_tile_m(M, Cin, Cout, vmem_budget_bytes=32 * 1024 * 1024)

    if single_buffer_weight:
        # Weight block index never changes; no need to double-buffer it.
        w_spec = pl.BlockSpec((Cin, Cout), lambda i: (0, 0),
                              pipeline_mode=pl.Buffered(1))
    else:
        w_spec = pl.BlockSpec((Cin, Cout), lambda i: (0, 0))

    out = pl.pallas_call(
        _transition_matmul_kernel,
        out_shape=jax.ShapeDtypeStruct((M, Cout), jnp.bfloat16),
        grid_spec=pltpu.PrefetchScalarGridSpec(
            num_scalar_prefetch=0,
            grid=(pl.cdiv(M, tile_m),),
            in_specs=[
                pl.BlockSpec((tile_m, Cin), lambda i: (i, 0)),   # pooled rows
                w_spec,                                           # conv weight
            ],
            out_specs=pl.BlockSpec((tile_m, Cout), lambda i: (i, 0)),
        ),
        compiler_params=pltpu.CompilerParams(
            dimension_semantics=("parallel",),
            vmem_limit_bytes=48 * 1024 * 1024,
        ),
    )(rows, wmat)

    # (N*Hq*Wq, Cout) -> NCHW; dtype cast fuses with the (small) transpose.
    out = jnp.transpose(out.reshape(N, Hq, Wq, Cout), (0, 3, 1, 2))
    return out.astype(x_nchw.dtype)


def _reference_forward(x_nchw, gamma, beta, running_mean, running_var, conv_w,
                       eps=1e-5):
    """Pure-JAX fp32 reference mirroring the PyTorch module (BN in eval mode)."""
    scale = gamma / jnp.sqrt(running_var + eps)
    shift = beta - running_mean * scale
    y = x_nchw * scale[None, :, None, None] + shift[None, :, None, None]
    y = jnp.maximum(y, 0.0)
    z = jnp.einsum('nchw,oc->nohw', y,
                   conv_w.reshape(conv_w.shape[0], conv_w.shape[1]))
    N, C, H, W = z.shape
    z = z.reshape(N, C, H // 2, 2, W // 2, 2).mean(axis=(3, 5))
    return z


if __name__ == "__main__":
    key = jax.random.PRNGKey(0)
    N, Cin, H, W = 2, 4, 16, 16
    Cout = 2

    k_x, k_g, k_b, k_m, k_v, k_w = jax.random.split(key, 6)
    x = jax.random.normal(k_x, (N, Cin, H, W), dtype=jnp.float32)
    gamma = jax.random.normal(k_g, (Cin,), dtype=jnp.float32) * 0.1 + 1.0
    beta = jax.random.normal(k_b, (Cin,), dtype=jnp.float32) * 0.1
    running_mean = jax.random.normal(k_m, (Cin,), dtype=jnp.float32) * 0.1
    running_var = jax.random.uniform(k_v, (Cin,), dtype=jnp.float32,
                                     minval=0.5, maxval=1.5)
    conv_w = jax.random.normal(k_w, (Cout, Cin, 1, 1), dtype=jnp.float32) * 0.1

    fwd = jax.jit(transition_forward,
                  static_argnames=("tile_m", "single_buffer_weight"))

    def run(tile_m, sbw):
        return jax.block_until_ready(
            fwd(x, gamma, beta, running_mean, running_var, conv_w,
                tile_m=tile_m, single_buffer_weight=sbw))

    # Primary path (single-buffered constant weight).  Fall back to the plain
    # double-buffered spec if this jax build rejects pl.Buffered(1).
    try:
        out = run(None, True)
        sbw = True
    except Exception:
        out = run(None, False)
        sbw = False

    ref = _reference_forward(x, gamma, beta, running_mean, running_var, conv_w)
    assert out.shape == (N, Cout, H // 2, W // 2), out.shape
    max_err = jnp.max(jnp.abs(out - ref))
    assert jnp.allclose(out, ref, atol=5e-2, rtol=5e-2), \
        f"max abs err = {max_err}"

    # Exercise the ragged-final-tile path (grid = cdiv(128, 48) = 3 blocks).
    out2 = run(48, sbw)
    max_err2 = jnp.max(jnp.abs(out2 - ref))
    assert jnp.allclose(out2, ref, atol=5e-2, rtol=5e-2), \
        f"max abs err (ragged tiles) = {max_err2}"

    print("KERNEL_OK")
</pallas_src>

<mosaic_0001>
module attributes {stable_mosaic.version = 11 : i64} {
  func.func @_transition_matmul_kernel(%arg0: i32, %arg1: memref<128x4xbf16, #tpu.memory_space<vmem>>, %arg2: memref<4x2xbf16, #tpu.memory_space<vmem>>, %arg3: memref<128x2xbf16, #tpu.memory_space<vmem>>) attributes {dimension_semantics = [#tpu.dimension_semantics<parallel>], iteration_bounds = array<i64: 1>, scalar_prefetch = 0 : i64, scratch_operands = 0 : i64, tpu.core_type = #tpu.core_type<tc>, window_params = [{transform_indices = @transform_0, window_bounds = array<i64: 128, 4>}, {pipeline_mode = #tpu.pipeline_mode<synchronous>, transform_indices = @transform_1, window_bounds = array<i64: 4, 2>}, {transform_indices = @transform_2, window_bounds = array<i64: 128, 2>}]} {
    %c0 = arith.constant 0 : index
    %c0_0 = arith.constant 0 : index
    %0 = vector.load %arg1[%c0, %c0_0] : memref<128x4xbf16, #tpu.memory_space<vmem>>, vector<128x4xbf16>
    %c0_1 = arith.constant 0 : index
    %c0_2 = arith.constant 0 : index
    %1 = vector.load %arg2[%c0_1, %c0_2] : memref<4x2xbf16, #tpu.memory_space<vmem>>, vector<4x2xbf16>
    %cst = arith.constant dense<0.000000e+00> : vector<128x2xf32>
    %2 = tpu.matmul %0, %1, %cst {dimension_numbers = #tpu.dot_dimension_numbers<[1], [0], [0], [1], [0, 0, 1, 1], [], []>} : vector<128x4xbf16>, vector<4x2xbf16>, vector<128x2xf32> -> vector<128x2xf32>
    %3 = arith.truncf %2 : vector<128x2xf32> to vector<128x2xbf16>
    %c0_3 = arith.constant 0 : index
    %c0_4 = arith.constant 0 : index
    %4 = vector.load %arg3[%c0_3, %c0_4] : memref<128x2xbf16, #tpu.memory_space<vmem>>, vector<128x2xbf16>
    tpu.vector_store %arg3[%c0_3, %c0_4], %3 {strides = array<i32>} : memref<128x2xbf16, #tpu.memory_space<vmem>>, vector<128x2xbf16>,
    return
  }
  func.func @transform_0(%arg0: i32) -> (i32, i32) {
    %c0_i32 = arith.constant 0 : i32
    %c0_i32_0 = arith.constant 0 : i32
    return %arg0, %c0_i32 : i32, i32
  }
  func.func @transform_1(%arg0: i32) -> (i32, i32) {
    %c0_i32 = arith.constant 0 : i32
    %c0_i32_0 = arith.constant 0 : i32
    %c0_i32_1 = arith.constant 0 : i32
    return %c0_i32, %c0_i32_0 : i32, i32
  }
  func.func @transform_2(%arg0: i32) -> (i32, i32) {
    %c0_i32 = arith.constant 0 : i32
    %c0_i32_0 = arith.constant 0 : i32
    return %arg0, %c0_i32 : i32, i32
  }
}

module attributes {stable_mosaic.version = 11 : i64} {
  func.func @_transition_matmul_kernel(%arg0: i32, %arg1: memref<128x4xbf16, #tpu.memory_space<vmem>>, %arg2: memref<4x2xbf16, #tpu.memory_space<vmem>>, %arg3: memref<128x2xbf16, #tpu.memory_space<vmem>>) attributes {dimension_semantics = [#tpu.dimension_semantics<parallel>], iteration_bounds = array<i64: 1>, scalar_prefetch = 0 : i64, scratch_operands = 0 : i64, tpu.core_type = #tpu.core_type<tc>, window_params = [{transform_indices = @transform_0, window_bounds = array<i64: 128, 4>}, {pipeline_mode = #tpu.pipeline_mode<synchronous>, transform_indices = @transform_1, window_bounds = array<i64: 4, 2>}, {transform_indices = @transform_2, window_bounds = array<i64: 128, 2>}]} {
    %c0 = arith.constant 0 : index
    %c0_0 = arith.constant 0 : index
    %0 = vector.load %arg1[%c0, %c0_0] : memref<128x4xbf16, #tpu.memory_space<vmem>>, vector<128x4xbf16>
    %c0_1 = arith.constant 0 : index
    %c0_2 = arith.constant 0 : index
    %1 = vector.load %arg2[%c0_1, %c0_2] : memref<4x2xbf16, #tpu.memory_space<vmem>>, vector<4x2xbf16>
    %cst = arith.constant dense<0.000000e+00> : vector<128x2xf32>
    %2 = tpu.matmul %0, %1, %cst {dimension_numbers = #tpu.dot_dimension_numbers<[1], [0], [0], [1], [0, 0, 1, 1], [], []>} : vector<128x4xbf16>, vector<4x2xbf16>, vector<128x2xf32> -> vector<128x2xf32>
    %3 = arith.truncf %2 : vector<128x2xf32> to vector<128x2xbf16>
    %c0_3 = arith.constant 0 : index
    %c0_4 = arith.constant 0 : index
    %4 = vector.load %arg3[%c0_3, %c0_4] : memref<128x2xbf16, #tpu.memory_space<vmem>>, vector<128x2xbf16>
    tpu.vector_store %arg3[%c0_3, %c0_4], %3 {strides = array<i32>} : memref<128x2xbf16, #tpu.memory_space<vmem>>, vector<128x2xbf16>,
    return
  }
  func.func @transform_0(%arg0: i32) -> (i32, i32) {
    %c0_i32 = arith.constant 0 : i32
    %c0_i32_0 = arith.constant 0 : i32
    return %arg0, %c0_i32 : i32, i32
  }
  func.func @transform_1(%arg0: i32) -> (i32, i32) {
    %c0_i32 = arith.constant 0 : i32
    %c0_i32_0 = arith.constant 0 : i32
    %c0_i32_1 = arith.constant 0 : i32
    return %c0_i32, %c0_i32_0 : i32, i32
  }
  func.func @transform_2(%arg0: i32) -> (i32, i32) {
    %c0_i32 = arith.constant 0 : i32
    %c0_i32_0 = arith.constant 0 : i32
    return %arg0, %c0_i32 : i32, i32
  }
}

</mosaic_0001>

<llo_original>
// kernel: transition_forward.1
$region0: #{transition_forward.1}
  #allocation0 [shape = 'u32[]', space=smem, size = 0x4, offset = 0x4, fixed_abs, tag = 'smem constant byte address 0x4 - core index']
  #allocation1 [shape = 'u32[144,128]{1,0:T(1,128)}', space=vmem, size = 0x12000, scoped, tag = 'internal scratch']
  %s0 = inlined_call_operand.vmem [shape: bf16[128,4], index: 0, kind: input, shape index: {}]
  %s1 = inlined_call_operand.vmem [shape: bf16[4,2], index: 1, kind: input, shape index: {}]
  %s2 = inlined_call_operand.vmem [shape: bf16[128,2], index: 2, kind: output, shape index: {}]
  %s3 = sld [smem:[#allocation0]]
  $region18: #{transition_forward.1} parent=0
    _
  %s5 = ssub.s32 1, %s3
  %s6 = scalar_select 0, %s5, %s3
  // Predicated region
  $region2: #{transition_forward.1} parent=0 // pred_check
    _
  $region3: #{transition_forward.1} parent=0 // pred_check_branch
    %8 = sbr.rel (0) target = $region5
  $region4: #{transition_forward.1} parent=0 // pred_region
    _
  $region5: #{transition_forward.1} parent=0 // pred_fallthru
    _
  // Predicated region
  $region6: #{transition_forward.1} parent=0 // pred_check
    _
  $region7: #{transition_forward.1} parent=0 // pred_check_branch
    %10 = sbr.rel (0) target = $region9
  $region8: #{transition_forward.1} parent=0 // pred_region
    _
  $region9: #{transition_forward.1} parent=0 // pred_fallthru
    _
  %v12 = vld [vmem:[%s0] sm:$0xf]
  %v13 = vld [vmem:[%s0 + $0x4] sm:$0xf]
  %v14 = vld [vmem:[%s0 + $0x8] sm:$0xf]
  %v15 = vld [vmem:[%s0 + $0xc] sm:$0xf]
  %v16 = vld [vmem:[%s0 + $0x10] sm:$0xf]
  %v17 = vld [vmem:[%s0 + $0x14] sm:$0xf]
  %v18 = vld [vmem:[%s0 + $0x18] sm:$0xf]
  %v19 = vld [vmem:[%s0 + $0x1c] sm:$0xf]
  %v20 = vld [vmem:[%s0 + $0x20] sm:$0xf]
  %v21 = vld [vmem:[%s0 + $0x24] sm:$0xf]
  %v22 = vld [vmem:[%s0 + $0x28] sm:$0xf]
  %v23 = vld [vmem:[%s0 + $0x2c] sm:$0xf]
  %v24 = vld [vmem:[%s0 + $0x30] sm:$0xf]
  %v25 = vld [vmem:[%s0 + $0x34] sm:$0xf]
  %v26 = vld [vmem:[%s0 + $0x38] sm:$0xf]
  %v27 = vld [vmem:[%s0 + $0x3c] sm:$0xf]
  %v28 = vld [vmem:[%s1] sm:$0x3]
  %v45 = vunpack.c.l.b16 %v12
  %v46 = vunpack.c.l.b16 %v13
  %v47 = vunpack.c.l.b16 %v14
  %v48 = vunpack.c.l.b16 %v15
  %v49 = vunpack.c.l.b16 %v16
  %v50 = vunpack.c.l.b16 %v17
  %v51 = vunpack.c.l.b16 %v18
  %v52 = vunpack.c.l.b16 %v19
  %v53 = vunpack.c.l.b16 %v20
  %v54 = vunpack.c.l.b16 %v21
  %v55 = vunpack.c.l.b16 %v22
  %v56 = vunpack.c.l.b16 %v23
  %v57 = vunpack.c.l.b16 %v24
  %v58 = vunpack.c.l.b16 %v25
  %v59 = vunpack.c.l.b16 %v26
  %v60 = vunpack.c.l.b16 %v27
  %v61 = vpack.c.b16 %v46, %v45
  %v62 = vpack.c.b16 %v48, %v47
  %v63 = vpack.c.b16 %v50, %v49
  %v64 = vpack.c.b16 %v52, %v51
  %v65 = vpack.c.b16 %v54, %v53
  %v66 = vpack.c.b16 %v56, %v55
  %v67 = vpack.c.b16 %v58, %v57
  %v68 = vpack.c.b16 %v60, %v59
  %vm69 = vcmask 31744
  %v71 = vsel %vm69, %v61, 0
  %v74 = vsel %vm69, %v62, 0
  %v77 = vsel %vm69, %v63, 0
  %v80 = vsel %vm69, %v64, 0
  %v83 = vsel %vm69, %v65, 0
  %v86 = vsel %vm69, %v66, 0
  %v89 = vsel %vm69, %v67, 0
  %v92 = vsel %vm69, %v68, 0
  %vm94 = vcmask 1041408
  %v96 = vsel %vm94, %v28, 0
  %98 = vmatprep.subr.bf16.mxu0 0
  %99 = vmatpush1.bf16.msra.mxu0 %v96
  %100 = vmatprep.subr.bf16.mxu0 0
  %101 = vmatpush1.bf16.msra.mxu0 0
  %102 = vmatprep.subr.bf16.mxu0 0
  %103 = vmatpush1.bf16.msra.mxu0 0
  %104 = vmatprep.subr.bf16.mxu0 0
  %105 = vmatpush1.bf16.msra.mxu0 0
  %106 = vmatprep.subr.bf16.mxu0 0
  %107 = vmatpush1.bf16.msra.mxu0 0
  %108 = vmatprep.subr.bf16.mxu0 0
  %109 = vmatpush1.bf16.msra.mxu0 0
  %110 = vmatprep.subr.bf16.mxu0 0
  %111 = vmatpush1.bf16.msra.mxu0 0
  %112 = vmatprep.subr.bf16.mxu0 0
  %113 = vmatpush1.bf16.msra.mxu0 0
  %114 = vmatprep.subr.bf16.mxu0 0
  %115 = vmatpush1.bf16.msra.mxu0 0
  %116 = vmatprep.subr.bf16.mxu0 0
  %117 = vmatpush1.bf16.msra.mxu0 0
  %118 = vmatprep.subr.bf16.mxu0 0
  %119 = vmatpush1.bf16.msra.mxu0 0
  %120 = vmatprep.subr.bf16.mxu0 0
  %121 = vmatpush1.bf16.msra.mxu0 0
  %122 = vmatprep.subr.bf16.mxu0 0
  %123 = vmatpush1.bf16.msra.mxu0 0
  %124 = vmatprep.subr.bf16.mxu0 0
  %125 = vmatpush1.bf16.msra.mxu0 0
  %126 = vmatprep.subr.bf16.mxu0 0
  %127 = vmatpush1.bf16.msra.mxu0 0
  %128 = vmatprep.subr.bf16.mxu0 0
  %129 = vmatpush1.bf16.msra.mxu0 0
  %130 = vmatprep.mubr.bf16.mxu0 0
  %131 = vmatmul.mubr.bf16.gmra.mrb[0].mxu0 %v71
  %v132 = vpop.f32.mrb[0].mxu0
  %v133 = vadd.f32 0.0, %v132
  %v134 = vpop.f32.mrb[0].mxu0
  %v135 = vpop.f32.mrb[0].mxu0
  %v136 = vadd.f32 0.0, %v135
  %v137 = vpop.f32.mrb[0].mxu0
  %138 = vmatprep.mubr.bf16.mxu0 0
  %139 = vmatmul.mubr.bf16.gmra.mrb[0].mxu0 %v74
  %v140 = vpop.f32.mrb[0].mxu0
  %v141 = vadd.f32 0.0, %v140
  %v142 = vpop.f32.mrb[0].mxu0
  %v143 = vpop.f32.mrb[0].mxu0
  %v144 = vadd.f32 0.0, %v143
  %v145 = vpop.f32.mrb[0].mxu0
  %146 = vmatprep.mubr.bf16.mxu0 0
  %147 = vmatmul.mubr.bf16.gmra.mrb[0].mxu0 %v77
  %v148 = vpop.f32.mrb[0].mxu0
  %v149 = vadd.f32 0.0, %v148
  %v150 = vpop.f32.mrb[0].mxu0
  %v151 = vpop.f32.mrb[0].mxu0
  %v152 = vadd.f32 0.0, %v151
  %v153 = vpop.f32.mrb[0].mxu0
  %154 = vmatprep.mubr.bf16.mxu0 0
  %155 = vmatmul.mubr.bf16.gmra.mrb[0].mxu0 %v80
  %v156 = vpop.f32.mrb[0].mxu0
  %v157 = vadd.f32 0.0, %v156
  %v158 = vpop.f32.mrb[0].mxu0
  %v159 = vpop.f32.mrb[0].mxu0
  %v160 = vadd.f32 0.0, %v159
  %v161 = vpop.f32.mrb[0].mxu0
  %162 = vmatprep.mubr.bf16.mxu0 0
  %163 = vmatmul.mubr.bf16.gmra.mrb[0].mxu0 %v83
  %v164 = vpop.f32.mrb[0].mxu0
  %v165 = vadd.f32 0.0, %v164
  %v166 = vpop.f32.mrb[0].mxu0
  %v167 = vpop.f32.mrb[0].mxu0
  %v168 = vadd.f32 0.0, %v167
  %v169 = vpop.f32.mrb[0].mxu0
  %170 = vmatprep.mubr.bf16.mxu0 0
  %171 = vmatmul.mubr.bf16.gmra.mrb[0].mxu0 %v86
  %v172 = vpop.f32.mrb[0].mxu0
  %v173 = vadd.f32 0.0, %v172
  %v174 = vpop.f32.mrb[0].mxu0
  %v175 = vpop.f32.mrb[0].mxu0
  %v176 = vadd.f32 0.0, %v175
  %v177 = vpop.f32.mrb[0].mxu0
  %178 = vmatprep.mubr.bf16.mxu0 0
  %179 = vmatmul.mubr.bf16.gmra.mrb[0].mxu0 %v89
  %v180 = vpop.f32.mrb[0].mxu0
  %v181 = vadd.f32 0.0, %v180
  %v182 = vpop.f32.mrb[0].mxu0
  %v183 = vpop.f32.mrb[0].mxu0
  %v184 = vadd.f32 0.0, %v183
  %v185 = vpop.f32.mrb[0].mxu0
  %186 = vmatprep.mubr.bf16.mxu0 0
  %187 = vmatmul.mubr.bf16.gmra.mrb[0].mxu0 %v92
  %v188 = vpop.f32.mrb[0].mxu0
  %v189 = vadd.f32 0.0, %v188
  %v190 = vpop.f32.mrb[0].mxu0
  %v191 = vpop.f32.mrb[0].mxu0
  %v192 = vadd.f32 0.0, %v191
  %v193 = vpop.f32.mrb[0].mxu0
  %194 = vdwg.mxu0
  %v195 = vpack.c.bf16 %v136, %v133
  %v196 = vpack.c.bf16 %v144, %v141
  %v197 = vpack.c.bf16 %v152, %v149
  %v198 = vpack.c.bf16 %v160, %v157
  %v199 = vpack.c.bf16 %v168, %v165
  %v200 = vpack.c.bf16 %v176, %v173
  %v201 = vpack.c.bf16 %v184, %v181
  %v202 = vpack.c.bf16 %v192, %v189
  %v211 = vunpack.c.l.b16 %v195
  %v212 = vunpack.c.h.b16 %v195
  %v213 = vunpack.c.l.b16 %v196
  %v214 = vunpack.c.h.b16 %v196
  %v215 = vunpack.c.l.b16 %v197
  %v216 = vunpack.c.h.b16 %v197
  %v217 = vunpack.c.l.b16 %v198
  %v218 = vunpack.c.h.b16 %v198
  %v219 = vunpack.c.l.b16 %v199
  %v220 = vunpack.c.h.b16 %v199
  %v221 = vunpack.c.l.b16 %v200
  %v222 = vunpack.c.h.b16 %v200
  %v223 = vunpack.c.l.b16 %v201
  %v224 = vunpack.c.h.b16 %v201
  %v225 = vunpack.c.l.b16 %v202
  %v226 = vunpack.c.h.b16 %v202
  %v227 = vpack.c.b16 %v211, %v211
  %v228 = vpack.c.b16 %v212, %v212
  %v229 = vpack.c.b16 %v213, %v213
  %v230 = vpack.c.b16 %v214, %v214
  %v231 = vpack.c.b16 %v215, %v215
  %v232 = vpack.c.b16 %v216, %v216
  %v233 = vpack.c.b16 %v217, %v217
  %v234 = vpack.c.b16 %v218, %v218
  %v235 = vpack.c.b16 %v219, %v219
  %v236 = vpack.c.b16 %v220, %v220
  %v237 = vpack.c.b16 %v221, %v221
  %v238 = vpack.c.b16 %v222, %v222
  %v239 = vpack.c.b16 %v223, %v223
  %v240 = vpack.c.b16 %v224, %v224
  %v241 = vpack.c.b16 %v225, %v225
  %v242 = vpack.c.b16 %v226, %v226
  %vm259 = vcmask 11264
  %260 = vst.msk [vmem:[%s2] sm:$0xf] %vm259, %v227
  %261 = vst.msk [vmem:[%s2 + $0x4] sm:$0xf] %vm259, %v228
  %262 = vst.msk [vmem:[%s2 + $0x8] sm:$0xf] %vm259, %v229
  %263 = vst.msk [vmem:[%s2 + $0xc] sm:$0xf] %vm259, %v230
  %264 = vst.msk [vmem:[%s2 + $0x10] sm:$0xf] %vm259, %v231
  %265 = vst.msk [vmem:[%s2 + $0x14] sm:$0xf] %vm259, %v232
  %266 = vst.msk [vmem:[%s2 + $0x18] sm:$0xf] %vm259, %v233
  %267 = vst.msk [vmem:[%s2 + $0x1c] sm:$0xf] %vm259, %v234
  %268 = vst.msk [vmem:[%s2 + $0x20] sm:$0xf] %vm259, %v235
  %269 = vst.msk [vmem:[%s2 + $0x24] sm:$0xf] %vm259, %v236
  %270 = vst.msk [vmem:[%s2 + $0x28] sm:$0xf] %vm259, %v237
  %271 = vst.msk [vmem:[%s2 + $0x2c] sm:$0xf] %vm259, %v238
  %272 = vst.msk [vmem:[%s2 + $0x30] sm:$0xf] %vm259, %v239
  %273 = vst.msk [vmem:[%s2 + $0x34] sm:$0xf] %vm259, %v240
  %274 = vst.msk [vmem:[%s2 + $0x38] sm:$0xf] %vm259, %v241
  %275 = vst.msk [vmem:[%s2 + $0x3c] sm:$0xf] %vm259, %v242
  // Predicated region
  $region10: #{transition_forward.1} parent=0 // pred_check
    _
  $region11: #{transition_forward.1} parent=0 // pred_check_branch
    %277 = sbr.rel (0) target = $region13
  $region12: #{transition_forward.1} parent=0 // pred_region
    _
  $region13: #{transition_forward.1} parent=0 // pred_fallthru
    _
  // Predicated region
  $region14: #{transition_forward.1} parent=0 // pred_check
    _
  $region15: #{transition_forward.1} parent=0 // pred_check_branch
    %279 = sbr.rel (0) target = $region17
  $region16: #{transition_forward.1} parent=0 // pred_region
    _
  $region17: #{transition_forward.1} parent=0 // pred_fallthru
    _

// kernel: transition_forward.1
$region0: #{transition_forward.1}
  #allocation0 [shape = 'u32[]', space=smem, size = 0x4, offset = 0x4, fixed_abs, tag = 'smem constant byte address 0x4 - core index']
  #allocation1 [shape = 'u32[144,128]{1,0:T(1,128)}', space=vmem, size = 0x12000, scoped, tag = 'internal scratch']
  %s0 = inlined_call_operand.vmem [shape: bf16[128,4], index: 0, kind: input, shape index: {}]
  %s1 = inlined_call_operand.vmem [shape: bf16[4,2], index: 1, kind: input, shape index: {}]
  %s2 = inlined_call_operand.vmem [shape: bf16[128,2], index: 2, kind: output, shape index: {}]
  %s3 = sld [smem:[#allocation0]]
  $region18: #{transition_forward.1} parent=0
    _
  %s5 = ssub.s32 1, %s3
  %s6 = scalar_select 0, %s5, %s3
  // Predicated region
  $region2: #{transition_forward.1} parent=0 // pred_check
    _
  $region3: #{transition_forward.1} parent=0 // pred_check_branch
    %8 = sbr.rel (0) target = $region5
  $region4: #{transition_forward.1} parent=0 // pred_region
    _
  $region5: #{transition_forward.1} parent=0 // pred_fallthru
    _
  // Predicated region
  $region6: #{transition_forward.1} parent=0 // pred_check
    _
  $region7: #{transition_forward.1} parent=0 // pred_check_branch
    %10 = sbr.rel (0) target = $region9
  $region8: #{transition_forward.1} parent=0 // pred_region
    _
  $region9: #{transition_forward.1} parent=0 // pred_fallthru
    _
  %v12 = vld [vmem:[%s0] sm:$0xf]
  %v13 = vld [vmem:[%s0 + $0x4] sm:$0xf]
  %v14 = vld [vmem:[%s0 + $0x8] sm:$0xf]
  %v15 = vld [vmem:[%s0 + $0xc] sm:$0xf]
  %v16 = vld [vmem:[%s0 + $0x10] sm:$0xf]
  %v17 = vld [vmem:[%s0 + $0x14] sm:$0xf]
  %v18 = vld [vmem:[%s0 + $0x18] sm:$0xf]
  %v19 = vld [vmem:[%s0 + $0x1c] sm:$0xf]
  %v20 = vld [vmem:[%s0 + $0x20] sm:$0xf]
  %v21 = vld [vmem:[%s0 + $0x24] sm:$0xf]
  %v22 = vld [vmem:[%s0 + $0x28] sm:$0xf]
  %v23 = vld [vmem:[%s0 + $0x2c] sm:$0xf]
  %v24 = vld [vmem:[%s0 + $0x30] sm:$0xf]
  %v25 = vld [vmem:[%s0 + $0x34] sm:$0xf]
  %v26 = vld [vmem:[%s0 + $0x38] sm:$0xf]
  %v27 = vld [vmem:[%s0 + $0x3c] sm:$0xf]
  %v28 = vld [vmem:[%s1] sm:$0x3]
  %v45 = vunpack.c.l.b16 %v12
  %v46 = vunpack.c.l.b16 %v13
  %v47 = vunpack.c.l.b16 %v14
  %v48 = vunpack.c.l.b16 %v15
  %v49 = vunpack.c.l.b16 %v16
  %v50 = vunpack.c.l.b16 %v17
  %v51 = vunpack.c.l.b16 %v18
  %v52 = vunpack.c.l.b16 %v19
  %v53 = vunpack.c.l.b16 %v20
  %v54 = vunpack.c.l.b16 %v21
  %v55 = vunpack.c.l.b16 %v22
  %v56 = vunpack.c.l.b16 %v23
  %v57 = vunpack.c.l.b16 %v24
  %v58 = vunpack.c.l.b16 %v25
  %v59 = vunpack.c.l.b16 %v26
  %v60 = vunpack.c.l.b16 %v27
  %v61 = vpack.c.b16 %v46, %v45
  %v62 = vpack.c.b16 %v48, %v47
  %v63 = vpack.c.b16 %v50, %v49
  %v64 = vpack.c.b16 %v52, %v51
  %v65 = vpack.c.b16 %v54, %v53
  %v66 = vpack.c.b16 %v56, %v55
  %v67 = vpack.c.b16 %v58, %v57
  %v68 = vpack.c.b16 %v60, %v59
  %vm69 = vcmask 31744
  %v71 = vsel %vm69, %v61, 0
  %v74 = vsel %vm69, %v62, 0
  %v77 = vsel %vm69, %v63, 0
  %v80 = vsel %vm69, %v64, 0
  %v83 = vsel %vm69, %v65, 0
  %v86 = vsel %vm69, %v66, 0
  %v89 = vsel %vm69, %v67, 0
  %v92 = vsel %vm69, %v68, 0
  %vm94 = vcmask 1041408
  %v96 = vsel %vm94, %v28, 0
  %98 = vmatprep.subr.bf16.mxu0 0
  %99 = vmatpush1.bf16.msra.mxu0 %v96
  %100 = vmatprep.subr.bf16.mxu0 0
  %101 = vmatpush1.bf16.msra.mxu0 0
  %102 = vmatprep.subr.bf16.mxu0 0
  %103 = vmatpush1.bf16.msra.mxu0 0
  %104 = vmatprep.subr.bf16.mxu0 0
  %105 = vmatpush1.bf16.msra.mxu0 0
  %106 = vmatprep.subr.bf16.mxu0 0
  %107 = vmatpush1.bf16.msra.mxu0 0
  %108 = vmatprep.subr.bf16.mxu0 0
  %109 = vmatpush1.bf16.msra.mxu0 0
  %110 = vmatprep.subr.bf16.mxu0 0
  %111 = vmatpush1.bf16.msra.mxu0 0
  %112 = vmatprep.subr.bf16.mxu0 0
  %113 = vmatpush1.bf16.msra.mxu0 0
  %114 = vmatprep.subr.bf16.mxu0 0
  %115 = vmatpush1.bf16.msra.mxu0 0
  %116 = vmatprep.subr.bf16.mxu0 0
  %117 = vmatpush1.bf16.msra.mxu0 0
  %118 = vmatprep.subr.bf16.mxu0 0
  %119 = vmatpush1.bf16.msra.mxu0 0
  %120 = vmatprep.subr.bf16.mxu0 0
  %121 = vmatpush1.bf16.msra.mxu0 0
  %122 = vmatprep.subr.bf16.mxu0 0
  %123 = vmatpush1.bf16.msra.mxu0 0
  %124 = vmatprep.subr.bf16.mxu0 0
  %125 = vmatpush1.bf16.msra.mxu0 0
  %126 = vmatprep.subr.bf16.mxu0 0
  %127 = vmatpush1.bf16.msra.mxu0 0
  %128 = vmatprep.subr.bf16.mxu0 0
  %129 = vmatpush1.bf16.msra.mxu0 0
  %130 = vmatprep.mubr.bf16.mxu0 0
  %131 = vmatmul.mubr.bf16.gmra.mrb[0].mxu0 %v71
  %v132 = vpop.f32.mrb[0].mxu0
  %v133 = vadd.f32 0.0, %v132
  %v134 = vpop.f32.mrb[0].mxu0
  %v135 = vpop.f32.mrb[0].mxu0
  %v136 = vadd.f32 0.0, %v135
  %v137 = vpop.f32.mrb[0].mxu0
  %138 = vmatprep.mubr.bf16.mxu0 0
  %139 = vmatmul.mubr.bf16.gmra.mrb[0].mxu0 %v74
  %v140 = vpop.f32.mrb[0].mxu0
  %v141 = vadd.f32 0.0, %v140
  %v142 = vpop.f32.mrb[0].mxu0
  %v143 = vpop.f32.mrb[0].mxu0
  %v144 = vadd.f32 0.0, %v143
  %v145 = vpop.f32.mrb[0].mxu0
  %146 = vmatprep.mubr.bf16.mxu0 0
  %147 = vmatmul.mubr.bf16.gmra.mrb[0].mxu0 %v77
  %v148 = vpop.f32.mrb[0].mxu0
  %v149 = vadd.f32 0.0, %v148
  %v150 = vpop.f32.mrb[0].mxu0
  %v151 = vpop.f32.mrb[0].mxu0
  %v152 = vadd.f32 0.0, %v151
  %v153 = vpop.f32.mrb[0].mxu0
  %154 = vmatprep.mubr.bf16.mxu0 0
  %155 = vmatmul.mubr.bf16.gmra.mrb[0].mxu0 %v80
  %v156 = vpop.f32.mrb[0].mxu0
  %v157 = vadd.f32 0.0, %v156
  %v158 = vpop.f32.mrb[0].mxu0
  %v159 = vpop.f32.mrb[0].mxu0
  %v160 = vadd.f32 0.0, %v159
  %v161 = vpop.f32.mrb[0].mxu0
  %162 = vmatprep.mubr.bf16.mxu0 0
  %163 = vmatmul.mubr.bf16.gmra.mrb[0].mxu0 %v83
  %v164 = vpop.f32.mrb[0].mxu0
  %v165 = vadd.f32 0.0, %v164
  %v166 = vpop.f32.mrb[0].mxu0
  %v167 = vpop.f32.mrb[0].mxu0
  %v168 = vadd.f32 0.0, %v167
  %v169 = vpop.f32.mrb[0].mxu0
  %170 = vmatprep.mubr.bf16.mxu0 0
  %171 = vmatmul.mubr.bf16.gmra.mrb[0].mxu0 %v86
  %v172 = vpop.f32.mrb[0].mxu0
  %v173 = vadd.f32 0.0, %v172
  %v174 = vpop.f32.mrb[0].mxu0
  %v175 = vpop.f32.mrb[0].mxu0
  %v176 = vadd.f32 0.0, %v175
  %v177 = vpop.f32.mrb[0].mxu0
  %178 = vmatprep.mubr.bf16.mxu0 0
  %179 = vmatmul.mubr.bf16.gmra.mrb[0].mxu0 %v89
  %v180 = vpop.f32.mrb[0].mxu0
  %v181 = vadd.f32 0.0, %v180
  %v182 = vpop.f32.mrb[0].mxu0
  %v183 = vpop.f32.mrb[0].mxu0
  %v184 = vadd.f32 0.0, %v183
  %v185 = vpop.f32.mrb[0].mxu0
  %186 = vmatprep.mubr.bf16.mxu0 0
  %187 = vmatmul.mubr.bf16.gmra.mrb[0].mxu0 %v92
  %v188 = vpop.f32.mrb[0].mxu0
  %v189 = vadd.f32 0.0, %v188
  %v190 = vpop.f32.mrb[0].mxu0
  %v191 = vpop.f32.mrb[0].mxu0
  %v192 = vadd.f32 0.0, %v191
  %v193 = vpop.f32.mrb[0].mxu0
  %194 = vdwg.mxu0
  %v195 = vpack.c.bf16 %v136, %v133
  %v196 = vpack.c.bf16 %v144, %v141
  %v197 = vpack.c.bf16 %v152, %v149
  %v198 = vpack.c.bf16 %v160, %v157
  %v199 = vpack.c.bf16 %v168, %v165
  %v200 = vpack.c.bf16 %v176, %v173
  %v201 = vpack.c.bf16 %v184, %v181
  %v202 = vpack.c.bf16 %v192, %v189
  %v211 = vunpack.c.l.b16 %v195
  %v212 = vunpack.c.h.b16 %v195
  %v213 = vunpack.c.l.b16 %v196
  %v214 = vunpack.c.h.b16 %v196
  %v215 = vunpack.c.l.b16 %v197
  %v216 = vunpack.c.h.b16 %v197
  %v217 = vunpack.c.l.b16 %v198
  %v218 = vunpack.c.h.b16 %v198
  %v219 = vunpack.c.l.b16 %v199
  %v220 = vunpack.c.h.b16 %v199
  %v221 = vunpack.c.l.b16 %v200
  %v222 = vunpack.c.h.b16 %v200
  %v223 = vunpack.c.l.b16 %v201
  %v224 = vunpack.c.h.b16 %v201
  %v225 = vunpack.c.l.b16 %v202
  %v226 = vunpack.c.h.b16 %v202
  %v227 = vpack.c.b16 %v211, %v211
  %v228 = vpack.c.b16 %v212, %v212
  %v229 = vpack.c.b16 %v213, %v213
  %v230 = vpack.c.b16 %v214, %v214
  %v231 = vpack.c.b16 %v215, %v215
  %v232 = vpack.c.b16 %v216, %v216
  %v233 = vpack.c.b16 %v217, %v217
  %v234 = vpack.c.b16 %v218, %v218
  %v235 = vpack.c.b16 %v219, %v219
  %v236 = vpack.c.b16 %v220, %v220
  %v237 = vpack.c.b16 %v221, %v221
  %v238 = vpack.c.b16 %v222, %v222
  %v239 = vpack.c.b16 %v223, %v223
  %v240 = vpack.c.b16 %v224, %v224
  %v241 = vpack.c.b16 %v225, %v225
  %v242 = vpack.c.b16 %v226, %v226
  %vm259 = vcmask 11264
  %260 = vst.msk [vmem:[%s2] sm:$0xf] %vm259, %v227
  %261 = vst.msk [vmem:[%s2 + $0x4] sm:$0xf] %vm259, %v228
  %262 = vst.msk [vmem:[%s2 + $0x8] sm:$0xf] %vm259, %v229
  %263 = vst.msk [vmem:[%s2 + $0xc] sm:$0xf] %vm259, %v230
  %264 = vst.msk [vmem:[%s2 + $0x10] sm:$0xf] %vm259, %v231
  %265 = vst.msk [vmem:[%s2 + $0x14] sm:$0xf] %vm259, %v232
  %266 = vst.msk [vmem:[%s2 + $0x18] sm:$0xf] %vm259, %v233
  %267 = vst.msk [vmem:[%s2 + $0x1c] sm:$0xf] %vm259, %v234
  %268 = vst.msk [vmem:[%s2 + $0x20] sm:$0xf] %vm259, %v235
  %269 = vst.msk [vmem:[%s2 + $0x24] sm:$0xf] %vm259, %v236
  %270 = vst.msk [vmem:[%s2 + $0x28] sm:$0xf] %vm259, %v237
  %271 = vst.msk [vmem:[%s2 + $0x2c] sm:$0xf] %vm259, %v238
  %272 = vst.msk [vmem:[%s2 + $0x30] sm:$0xf] %vm259, %v239
  %273 = vst.msk [vmem:[%s2 + $0x34] sm:$0xf] %vm259, %v240
  %274 = vst.msk [vmem:[%s2 + $0x38] sm:$0xf] %vm259, %v241
  %275 = vst.msk [vmem:[%s2 + $0x3c] sm:$0xf] %vm259, %v242
  // Predicated region
  $region10: #{transition_forward.1} parent=0 // pred_check
    _
  $region11: #{transition_forward.1} parent=0 // pred_check_branch
    %277 = sbr.rel (0) target = $region13
  $region12: #{transition_forward.1} parent=0 // pred_region
    _
  $region13: #{transition_forward.1} parent=0 // pred_fallthru
    _
  // Predicated region
  $region14: #{transition_forward.1} parent=0 // pred_check
    _
  $region15: #{transition_forward.1} parent=0 // pred_check_branch
    %279 = sbr.rel (0) target = $region17
  $region16: #{transition_forward.1} parent=0 // pred_region
    _
  $region17: #{transition_forward.1} parent=0 // pred_fallthru
    _

</llo_original>
